<compile_context>
chip_gen: v7x
topology: tpu7x:2x2x1
jax: 0.10.0
libtpu: 0.0.40
codegen_flags: <defaults>
</compile_context>

<pallas_src>
import functools

import jax
import jax.numpy as jnp
from jax.experimental import pallas as pl
from jax.experimental.pallas import tpu as pltpu

FEATURE_DIM = 512   # nn.LayerNorm(feature_dim) / nn.Linear(feature_dim, 128)
HIDDEN = 128
LN_EPS = 1e-5       # torch.nn.LayerNorm default eps
MAX_TILE_N = 512    # rows of x per grid step (v5e 16 MiB scoped-VMEM safe)


def _instance_logits(x_ref, gamma_ref, beta_ref, w1_ref, b1_ref, w2_ref):
    """Per-instance attention logits (without b2) for one (TILE_N, D) tile."""
    x = x_ref[...].astype(jnp.float32)                         # bf16 DMA -> f32 math

    # --- LayerNorm over the feature (lane) dim, single-pass statistics ---
    mean = jnp.mean(x, axis=-1, keepdims=True)                 # (TILE_N, 1)
    ex2 = jnp.mean(x * x, axis=-1, keepdims=True)              # (TILE_N, 1)
    var = ex2 - mean * mean                                    # biased var (torch LN)
    inv = jax.lax.rsqrt(var + LN_EPS)
    xn = (x - mean) * inv * gamma_ref[...] + beta_ref[...]     # (TILE_N, D), f32

    # --- Linear(D -> H) on the MXU in bf16, f32 accumulate, then Tanh ---
    h = jnp.tanh(
        jnp.dot(xn.astype(jnp.bfloat16), w1_ref[...],
                preferred_element_type=jnp.float32) + b1_ref[...]
    )                                                          # (TILE_N, H), f32

    # Dropout(0.3): identity at inference time (eval-mode semantics).
    # TODO(synk): training-mode dropout (pltpu.prng_random_bits mask) not emitted.

    # --- Linear(H -> 1) as VPU multiply + lane reduce; b2 omitted (softmax
    #     over dim 0 is invariant to a constant shift of the logits) ---
    return jnp.sum(h * w2_ref[...], axis=-1, keepdims=True)    # (TILE_N, 1), f32


def _attn_logits_kernel(x_ref, gamma_ref, beta_ref, w1_ref, b1_ref, w2_ref, out_ref):
    """Multi-tile path: emit per-instance logits; softmax finished in XLA."""
    a = _instance_logits(x_ref, gamma_ref, beta_ref, w1_ref, b1_ref, w2_ref)
    out_ref[...] = a.astype(out_ref.dtype)


def _attn_softmax_kernel(x_ref, gamma_ref, beta_ref, w1_ref, b1_ref, w2_ref,
                         out_ref, *, n_valid):
    """Fused single-tile path: logits + softmax over dim 0 in one launch."""
    a = _instance_logits(x_ref, gamma_ref, beta_ref, w1_ref, b1_ref, w2_ref)
    # Ragged tile: rows >= n_valid hold garbage from the out-of-range read; mask
    # them to -inf so they get zero softmax weight (and their stores are dropped).
    rows = jax.lax.broadcasted_iota(jnp.int32, a.shape, 0)
    a = jnp.where(rows < n_valid, a, -jnp.inf)
    m = jnp.max(a, axis=0, keepdims=True)
    p = jnp.exp(a - m)
    denom = jnp.sum(p, axis=0, keepdims=True)
    out_ref[...] = (p * pl.reciprocal(denom, approx=True)).astype(out_ref.dtype)


def attention_mil(x, gamma, beta, w1, b1, w2, b2=None, *, max_tile_n=MAX_TILE_N):
    """AttentionMIL forward. x: (N, D). Weights pre-transposed: w1 (D,H), w2 (H,1).

    b2 is accepted for API fidelity but mathematically irrelevant to the softmax.
    """
    del b2
    n, d = x.shape
    h = w1.shape[1]

    # Balanced tiling: fewest tiles with <= max_tile_n rows; even tile count when
    # multi-tile (v7x megacore shards the "parallel" axis across the 2 TCs).
    n_tiles = pl.cdiv(n, max_tile_n)
    if n_tiles > 1 and n_tiles % 2 == 1:
        n_tiles += 1
    tile_n = ((pl.cdiv(n, n_tiles) + 7) // 8) * 8      # sublane-aligned

    # bf16 staging of x: halves the dominant HBM read (kernel is mem-bound).
    x_bf = x.astype(jnp.bfloat16)
    gamma2 = gamma.reshape(1, d).astype(jnp.float32)
    beta2 = beta.reshape(1, d).astype(jnp.float32)
    w1_bf = w1.astype(jnp.bfloat16)                    # (D, H) MXU operand
    b1_2 = b1.reshape(1, h).astype(jnp.float32)
    w2_row = w2.reshape(1, h).astype(jnp.float32)      # (1, H) row for VPU reduce

    const = lambda i: (0, 0)   # parameters: same block every step -> DMA'd once
    in_specs = [
        pl.BlockSpec((tile_n, d), lambda i: (i, 0)),   # x tile (ragged last block)
        pl.BlockSpec((1, d), const),                   # gamma
        pl.BlockSpec((1, d), const),                   # beta
        pl.BlockSpec((d, h), const),                   # w1 (bf16)
        pl.BlockSpec((1, h), const),                   # b1
        pl.BlockSpec((1, h), const),                   # w2 row
    ]
    out_spec = pl.BlockSpec((tile_n, 1), lambda i: (i, 0))
    cparams = pltpu.CompilerParams(dimension_semantics=("parallel",))
    args = (x_bf, gamma2, beta2, w1_bf, b1_2, w2_row)

    if n_tiles == 1:
        # Fused path (production N~8): one launch, softmax done in-kernel.
        return pl.pallas_call(
            functools.partial(_attn_softmax_kernel, n_valid=n),
            out_shape=jax.ShapeDtypeStruct((n, 1), jnp.float32),
            grid=(1,),
            in_specs=in_specs,
            out_specs=out_spec,
            compiler_params=cparams,
        )(*args)

    # Multi-tile path: per-instance logits in the kernel; the tiny (N, 1) softmax
    # over dim 0 couples all rows, so it is finished in plain XLA.
    logits = pl.pallas_call(
        _attn_logits_kernel,
        out_shape=jax.ShapeDtypeStruct((n, 1), jnp.float32),
        grid=(n_tiles,),
        in_specs=in_specs,
        out_specs=out_spec,
        compiler_params=cparams,
    )(*args)
    return jax.nn.softmax(logits, axis=0)


def attention_mil_ref(x, gamma, beta, w1, b1, w2, b2):
    """Pure-JAX f32 reference matching the torch module (eval mode)."""
    mean = jnp.mean(x, axis=-1, keepdims=True)
    var = jnp.mean((x - mean) ** 2, axis=-1, keepdims=True)
    xn = (x - mean) / jnp.sqrt(var + LN_EPS) * gamma + beta
    hh = jnp.tanh(xn @ w1 + b1)
    a = hh @ w2 + b2
    return jax.nn.softmax(a, axis=0)


if __name__ == "__main__":
    key = jax.random.PRNGKey(0)
    k_x, k_g, k_b, k_w1, k_b1, k_w2, k_b2 = jax.random.split(key, 7)

    # Deterministic synthetic parameters (shapes from the module's __init__).
    gamma = 1.0 + 0.1 * jax.random.normal(k_g, (FEATURE_DIM,), jnp.float32)
    beta = 0.1 * jax.random.normal(k_b, (FEATURE_DIM,), jnp.float32)
    w1 = 0.02 * jax.random.normal(k_w1, (FEATURE_DIM, HIDDEN), jnp.float32)  # Linear1 W^T
    b1 = 0.02 * jax.random.normal(k_b1, (HIDDEN,), jnp.float32)
    w2 = 0.05 * jax.random.normal(k_w2, (HIDDEN, 1), jnp.float32)            # Linear2 W^T
    b2 = 0.01 * jax.random.normal(k_b2, (1,), jnp.float32)

    # N=8: production-size bag, fused single-tile exact.
    # N=100: fused single-tile with a ragged (masked) tail.
    # N=600: 2-tile unfused path with ragged last block.
    # N=2500: multi-tile path, odd tile count rounded to even (v7x-friendly).
    for n in (8, 100, 600, 2500):
        x = jax.random.normal(jax.random.fold_in(k_x, n), (n, FEATURE_DIM), jnp.float32)
        out = jax.block_until_ready(attention_mil(x, gamma, beta, w1, b1, w2, b2))
        ref = attention_mil_ref(x, gamma, beta, w1, b1, w2, b2)
        assert out.shape == (n, 1), out.shape
        # approx reciprocal (fused path) + bf16 staging -> relaxed tolerances.
        assert jnp.allclose(jnp.sum(out), 1.0, atol=2e-3), (n, float(jnp.sum(out)))
        assert jnp.allclose(out, ref, atol=2e-3, rtol=3e-2), (
            n, float(jnp.max(jnp.abs(out - ref))))

    print("KERNEL_OK")
</pallas_src>

<mosaic_0001>
module attributes {stable_mosaic.version = 11 : i64} {
  func.func @_attn_softmax_kernel(%arg0: i32, %arg1: memref<8x512xbf16, #tpu.memory_space<vmem>>, %arg2: memref<1x512xf32, #tpu.memory_space<vmem>>, %arg3: memref<1x512xf32, #tpu.memory_space<vmem>>, %arg4: memref<512x128xbf16, #tpu.memory_space<vmem>>, %arg5: memref<1x128xf32, #tpu.memory_space<vmem>>, %arg6: memref<1x128xf32, #tpu.memory_space<vmem>>, %arg7: memref<8x1xf32, #tpu.memory_space<vmem>>) attributes {dimension_semantics = [#tpu.dimension_semantics<parallel>], iteration_bounds = array<i64: 1>, scalar_prefetch = 0 : i64, scratch_operands = 0 : i64, tpu.core_type = #tpu.core_type<tc>, window_params = [{transform_indices = @transform_0, window_bounds = array<i64: 8, 512>}, {pipeline_mode = #tpu.pipeline_mode<synchronous>, transform_indices = @transform_1, window_bounds = array<i64: 1, 512>}, {pipeline_mode = #tpu.pipeline_mode<synchronous>, transform_indices = @transform_2, window_bounds = array<i64: 1, 512>}, {pipeline_mode = #tpu.pipeline_mode<synchronous>, transform_indices = @transform_3, window_bounds = array<i64: 512, 128>}, {pipeline_mode = #tpu.pipeline_mode<synchronous>, transform_indices = @transform_4, window_bounds = array<i64: 1, 128>}, {pipeline_mode = #tpu.pipeline_mode<synchronous>, transform_indices = @transform_5, window_bounds = array<i64: 1, 128>}, {transform_indices = @transform_6, window_bounds = array<i64: 8, 1>}]} {
    %c0 = arith.constant 0 : index
    %c0_0 = arith.constant 0 : index
    %0 = vector.load %arg1[%c0, %c0_0] : memref<8x512xbf16, #tpu.memory_space<vmem>>, vector<8x512xbf16>
    %1 = arith.extf %0 : vector<8x512xbf16> to vector<8x512xf32>
    %cst = arith.constant dense<0.000000e+00> : vector<8xf32>
    %2 = vector.multi_reduction <add>, %1, %cst [1] : vector<8x512xf32> to vector<8xf32>
    %3 = vector.shape_cast %2 : vector<8xf32> to vector<8x1xf32>
    %cst_1 = arith.constant 5.120000e+02 : f32
    %4 = vector.broadcast %cst_1 : f32 to vector<8x1xf32>
    %5 = arith.divf %3, %4 : vector<8x1xf32>
    %6 = arith.mulf %1, %1 : vector<8x512xf32>
    %cst_2 = arith.constant dense<0.000000e+00> : vector<8xf32>
    %7 = vector.multi_reduction <add>, %6, %cst_2 [1] : vector<8x512xf32> to vector<8xf32>
    %8 = vector.shape_cast %7 : vector<8xf32> to vector<8x1xf32>
    %cst_3 = arith.constant 5.120000e+02 : f32
    %9 = vector.broadcast %cst_3 : f32 to vector<8x1xf32>
    %10 = arith.divf %8, %9 : vector<8x1xf32>
    %11 = arith.mulf %5, %5 : vector<8x1xf32>
    %12 = arith.subf %10, %11 : vector<8x1xf32>
    %cst_4 = arith.constant 9.99999974E-6 : f32
    %13 = vector.broadcast %cst_4 : f32 to vector<8x1xf32>
    %14 = arith.addf %12, %13 : vector<8x1xf32>
    %15 = math.rsqrt %14 : vector<8x1xf32>
    %16 = vector.broadcast %5 : vector<8x1xf32> to vector<8x512xf32>
    %17 = arith.subf %1, %16 : vector<8x512xf32>
    %18 = vector.broadcast %15 : vector<8x1xf32> to vector<8x512xf32>
    %19 = arith.mulf %17, %18 : vector<8x512xf32>
    %c0_5 = arith.constant 0 : index
    %c0_6 = arith.constant 0 : index
    %20 = vector.load %arg2[%c0_5, %c0_6] : memref<1x512xf32, #tpu.memory_space<vmem>>, vector<1x512xf32>
    %21 = vector.broadcast %20 : vector<1x512xf32> to vector<8x512xf32>
    %22 = arith.mulf %19, %21 : vector<8x512xf32>
    %c0_7 = arith.constant 0 : index
    %c0_8 = arith.constant 0 : index
    %23 = vector.load %arg3[%c0_7, %c0_8] : memref<1x512xf32, #tpu.memory_space<vmem>>, vector<1x512xf32>
    %24 = vector.broadcast %23 : vector<1x512xf32> to vector<8x512xf32>
    %25 = arith.addf %22, %24 : vector<8x512xf32>
    %26 = arith.truncf %25 : vector<8x512xf32> to vector<8x512xbf16>
    %c0_9 = arith.constant 0 : index
    %c0_10 = arith.constant 0 : index
    %27 = vector.load %arg4[%c0_9, %c0_10] : memref<512x128xbf16, #tpu.memory_space<vmem>>, vector<512x128xbf16>
    %cst_11 = arith.constant dense<0.000000e+00> : vector<8x128xf32>
    %28 = tpu.matmul %26, %27, %cst_11 {dimension_numbers = #tpu.dot_dimension_numbers<[1], [0], [0], [1], [0, 0, 1, 1], [], []>} : vector<8x512xbf16>, vector<512x128xbf16>, vector<8x128xf32> -> vector<8x128xf32>
    %c0_12 = arith.constant 0 : index
    %c0_13 = arith.constant 0 : index
    %29 = vector.load %arg5[%c0_12, %c0_13] : memref<1x128xf32, #tpu.memory_space<vmem>>, vector<1x128xf32>
    %30 = vector.broadcast %29 : vector<1x128xf32> to vector<8x128xf32>
    %31 = arith.addf %28, %30 : vector<8x128xf32>
    %32 = math.tanh %31 : vector<8x128xf32>
    %c0_14 = arith.constant 0 : index
    %c0_15 = arith.constant 0 : index
    %33 = vector.load %arg6[%c0_14, %c0_15] : memref<1x128xf32, #tpu.memory_space<vmem>>, vector<1x128xf32>
    %34 = vector.broadcast %33 : vector<1x128xf32> to vector<8x128xf32>
    %35 = arith.mulf %32, %34 : vector<8x128xf32>
    %cst_16 = arith.constant dense<0.000000e+00> : vector<8xf32>
    %36 = vector.multi_reduction <add>, %35, %cst_16 [1] : vector<8x128xf32> to vector<8xf32>
    %37 = vector.shape_cast %36 : vector<8xf32> to vector<8x1xf32>
    %38 = tpu.iota {dimensions = array<i32: 0>} : vector<8x1xi32>
    %c8_i32 = arith.constant 8 : i32
    %39 = vector.broadcast %c8_i32 : i32 to vector<8x1xi32>
    %40 = arith.cmpi slt, %38, %39 : vector<8x1xi32>
    %cst_17 = arith.constant 0xFF800000 : f32
    %41 = vector.broadcast %cst_17 : f32 to vector<8x1xf32>
    %42 = arith.select %40, %37, %41 : vector<8x1xi1>, vector<8x1xf32>
    %cst_18 = arith.constant dense<0xFF800000> : vector<1xf32>
    %43 = vector.multi_reduction <maximumf>, %42, %cst_18 [0] : vector<8x1xf32> to vector<1xf32>
    %44 = vector.shape_cast %43 : vector<1xf32> to vector<1x1xf32>
    %45 = vector.broadcast %44 : vector<1x1xf32> to vector<8x1xf32>
    %46 = arith.subf %42, %45 : vector<8x1xf32>
    %47 = math.exp %46 : vector<8x1xf32>
    %cst_19 = arith.constant dense<0.000000e+00> : vector<1xf32>
    %48 = vector.multi_reduction <add>, %47, %cst_19 [0] : vector<8x1xf32> to vector<1xf32>
    %49 = vector.shape_cast %48 : vector<1xf32> to vector<1x1xf32>
    %50 = tpu.reciprocal %49 {approx = true} : vector<1x1xf32> -> vector<1x1xf32>
    %51 = vector.broadcast %50 : vector<1x1xf32> to vector<8x1xf32>
    %52 = arith.mulf %47, %51 : vector<8x1xf32>
    %c0_20 = arith.constant 0 : index
    %c0_21 = arith.constant 0 : index
    %53 = vector.load %arg7[%c0_20, %c0_21] : memref<8x1xf32, #tpu.memory_space<vmem>>, vector<8x1xf32>
    tpu.vector_store %arg7[%c0_20, %c0_21], %52 {strides = array<i32>} : memref<8x1xf32, #tpu.memory_space<vmem>>, vector<8x1xf32>,
    return
  }
  func.func @transform_0(%arg0: i32) -> (i32, i32) {
    %c0_i32 = arith.constant 0 : i32
    %c0_i32_0 = arith.constant 0 : i32
    return %arg0, %c0_i32 : i32, i32
  }
  func.func @transform_1(%arg0: i32) -> (i32, i32) {
    %c0_i32 = arith.constant 0 : i32
    %c0_i32_0 = arith.constant 0 : i32
    %c0_i32_1 = arith.constant 0 : i32
    return %c0_i32, %c0_i32_0 : i32, i32
  }
  func.func @transform_2(%arg0: i32) -> (i32, i32) {
    %c0_i32 = arith.constant 0 : i32
    %c0_i32_0 = arith.constant 0 : i32
    %c0_i32_1 = arith.constant 0 : i32
    return %c0_i32, %c0_i32_0 : i32, i32
  }
  func.func @transform_3(%arg0: i32) -> (i32, i32) {
    %c0_i32 = arith.constant 0 : i32
    %c0_i32_0 = arith.constant 0 : i32
    %c0_i32_1 = arith.constant 0 : i32
    return %c0_i32, %c0_i32_0 : i32, i32
  }
  func.func @transform_4(%arg0: i32) -> (i32, i32) {
    %c0_i32 = arith.constant 0 : i32
    %c0_i32_0 = arith.constant 0 : i32
    %c0_i32_1 = arith.constant 0 : i32
    return %c0_i32, %c0_i32_0 : i32, i32
  }
  func.func @transform_5(%arg0: i32) -> (i32, i32) {
    %c0_i32 = arith.constant 0 : i32
    %c0_i32_0 = arith.constant 0 : i32
    %c0_i32_1 = arith.constant 0 : i32
    return %c0_i32, %c0_i32_0 : i32, i32
  }
  func.func @transform_6(%arg0: i32) -> (i32, i32) {
    %c0_i32 = arith.constant 0 : i32
    %c0_i32_0 = arith.constant 0 : i32
    return %arg0, %c0_i32 : i32, i32
  }
}

</mosaic_0001>

<llo_original>
// kernel: tpu_custom_call.1
$region0: #{tpu_custom_call.1}
  #allocation0 [shape = 'u32[]', space=smem, size = 0x4, offset = 0x4, fixed_abs, tag = 'smem constant byte address 0x4 - core index']
  #allocation1 [shape = 'u32[144,128]{1,0:T(1,128)}', space=vmem, size = 0x12000, scoped, tag = 'internal scratch']
  %s0 = inlined_call_operand.hbm [shape: bf16[8,512], index: 0, kind: input, shape index: {}]
  %s1 = inlined_call_operand.hbm [shape: f32[1,512], index: 1, kind: input, shape index: {}]
  %s2 = inlined_call_operand.vmem [shape: f32[1,512], index: 2, kind: input, shape index: {}]
  %s3 = inlined_call_operand.hbm [shape: bf16[512,128], index: 3, kind: input, shape index: {}]
  %s4 = inlined_call_operand.vmem [shape: f32[1,128], index: 4, kind: input, shape index: {}]
  %s5 = inlined_call_operand.vmem [shape: f32[1,128], index: 5, kind: input, shape index: {}]
  %s6 = inlined_call_operand.vmem [shape: f32[8,1], index: 6, kind: output, shape index: {}]
  %s7 = sld [smem:[#allocation0]]
  $region46: #{tpu_custom_call.1} parent=0
    _
  %s9 = ssub.s32 1, %s7
  %s10 = scalar_select 0, %s9, %s7
  $region1: #{tpu_custom_call.1} parent=0
    #allocation2 [shape = 'u8[8192]{0}', space=vmem, size = 0x2000, scoped, tag = 'input window, operand 0, single buffered']
    #allocation3 [shape = 's32[1]{0}', space=sflag, size = 0x4, scoped, tag = 'scoped memory for tpu_custom_call.1']
    #allocation4 [shape = 'u8[2048]{0}', space=vmem, size = 0x800, scoped, tag = 'input window, operand 1, single buffered']
    #allocation5 [shape = 's32[1]{0}', space=sflag, size = 0x4, scoped, tag = 'scoped memory for tpu_custom_call.1']
    #allocation6 [shape = 'u8[131072]{0}', space=vmem, size = 0x20000, scoped, tag = 'input window, operand 3, single buffered']
    %11 = vsyncpa [#allocation3], 0
    %12 = vsyncpa [#allocation5], 0
    // Predicated region
    $region2: #{tpu_custom_call.1} parent=1 // pred_check
      _
    $region3: #{tpu_custom_call.1} parent=1 // pred_check_branch
      %14 = sbr.rel (0) target = $region5
    $region4: #{tpu_custom_call.1} parent=1 // pred_region
      %s16 = ssub.s32 256, 256
      %17 = vsyncadd [#allocation3], %s16
      %s19 = sshll.u32 [#allocation2], 4
      %s20 = int_to_ptr.vmem [resolvable:$true] %s19
      %22 = dma.hbm_to_vmem [thread:$0]  %s0, 256, %s20, [#allocation3]
    $region5: #{tpu_custom_call.1} parent=1 // pred_fallthru
      _
    // Predicated region
    $region6: #{tpu_custom_call.1} parent=1 // pred_check
      _
    $region7: #{tpu_custom_call.1} parent=1 // pred_check_branch
      %24 = sbr.rel (0) target = $region9
    $region8: #{tpu_custom_call.1} parent=1 // pred_region
      %s26 = ssub.s32 64, 64
      %27 = vsyncadd [#allocation5], %s26
      %s29 = sshll.u32 [#allocation4], 4
      %s30 = int_to_ptr.vmem [resolvable:$true] %s29
      %32 = dma.hbm_to_vmem [thread:$0]  %s1, 64, %s30, [#allocation5]
    $region9: #{tpu_custom_call.1} parent=1 // pred_fallthru
      _
    // Predicated region
    $region10: #{tpu_custom_call.1} parent=1 // pred_check
      _
    $region11: #{tpu_custom_call.1} parent=1 // pred_check_branch
      %34 = sbr.rel (0) target = $region13
    $region12: #{tpu_custom_call.1} parent=1 // pred_region
      _
    $region13: #{tpu_custom_call.1} parent=1 // pred_fallthru
      _
    // Predicated region
    $region14: #{tpu_custom_call.1} parent=1 // pred_check
      _
    $region15: #{tpu_custom_call.1} parent=1 // pred_check_branch
      %36 = sbr.rel (0) target = $region17
    $region16: #{tpu_custom_call.1} parent=1 // pred_region
      %s38 = ssub.s32 4096, 4096
      %39 = vsyncadd [#allocation5], %s38
      %s40 = sshll.u32 [#allocation6], 4
      %s41 = int_to_ptr.vmem [resolvable:$true] %s40
      %46 = dma.hbm_to_vmem [thread:$0]  %s3, 4096, %s41, [#allocation5], 64, 64, 4
    $region17: #{tpu_custom_call.1} parent=1 // pred_fallthru
      _
    // Predicated region
    $region18: #{tpu_custom_call.1} parent=1 // pred_check
      _
    $region19: #{tpu_custom_call.1} parent=1 // pred_check_branch
      %48 = sbr.rel (0) target = $region21
    $region20: #{tpu_custom_call.1} parent=1 // pred_region
      _
    $region21: #{tpu_custom_call.1} parent=1 // pred_fallthru
      _
    // Predicated region
    $region22: #{tpu_custom_call.1} parent=1 // pred_check
      _
    $region23: #{tpu_custom_call.1} parent=1 // pred_check_branch
      %50 = sbr.rel (0) target = $region25
    $region24: #{tpu_custom_call.1} parent=1 // pred_region
      _
    $region25: #{tpu_custom_call.1} parent=1 // pred_fallthru
      _
    // Predicated region
    $region26: #{tpu_custom_call.1} parent=1 // pred_check
      _
    $region27: #{tpu_custom_call.1} parent=1 // pred_check_branch
      %52 = sbr.rel (0) target = $region29
    $region28: #{tpu_custom_call.1} parent=1 // pred_region
      %53 = dma.done [#allocation3], 256
    $region29: #{tpu_custom_call.1} parent=1 // pred_fallthru
      _
    // Predicated region
    $region30: #{tpu_custom_call.1} parent=1 // pred_check
      _
    $region31: #{tpu_custom_call.1} parent=1 // pred_check_branch
      %55 = sbr.rel (0) target = $region33
    $region32: #{tpu_custom_call.1} parent=1 // pred_region
      %56 = dma.done [#allocation5], 64
    $region33: #{tpu_custom_call.1} parent=1 // pred_fallthru
      _
    // Predicated region
    $region34: #{tpu_custom_call.1} parent=1 // pred_check
      _
    $region35: #{tpu_custom_call.1} parent=1 // pred_check_branch
      %58 = sbr.rel (0) target = $region37
    $region36: #{tpu_custom_call.1} parent=1 // pred_region
      %59 = dma.done [#allocation5], 4096
    $region37: #{tpu_custom_call.1} parent=1 // pred_fallthru
      _
    %v61 = vld [vmem:[#allocation2] sm:$0xff]
    %v62 = vld [vmem:[#allocation2 + $0x8] sm:$0xff]
    %v63 = vunpack.c.l.bf16 %v61
    %v64 = vunpack.c.h.bf16 %v61
    %v65 = vunpack.c.l.bf16 %v62
    %v66 = vunpack.c.h.bf16 %v62
    %v67 = vadd.f32 %v63, %v64
    %v68 = vadd.f32 %v67, %v65
    %v69 = vadd.f32 %v68, %v66
    %70 = vadd.xlane.f32.xlu0 %v69
    %v71 = vpop.xlane.xlu0 %70
    %v72 = vrcp.pop 512.0
    %v73 = vmul.f32 %v71, %v72
    %v74 = vmul.f32 %v63, %v63
    %v75 = vmul.f32 %v64, %v64
    %v76 = vmul.f32 %v65, %v65
    %v77 = vmul.f32 %v66, %v66
    %v78 = vadd.f32 %v74, %v75
    %v79 = vadd.f32 %v78, %v76
    %v80 = vadd.f32 %v79, %v77
    %81 = vadd.xlane.f32.xlu0 %v80
    %v82 = vpop.xlane.xlu0 %81
    %v83 = vmul.f32 %v82, %v72
    %v84 = vmul.f32 %v73, %v73
    %v85 = vsub.f32 %v83, %v84
    %v86 = vadd.f32 %v85, 1e-05
    %v87 = vrsqrt.pop %v86
    %v88 = vsub.f32 %v63, %v73
    %v89 = vsub.f32 %v64, %v73
    %v90 = vsub.f32 %v65, %v73
    %v91 = vsub.f32 %v66, %v73
    %v92 = vmul.f32 %v88, %v87
    %v93 = vmul.f32 %v89, %v87
    %v94 = vmul.f32 %v90, %v87
    %v95 = vmul.f32 %v91, %v87
    %v96 = vld [vmem:[#allocation4] sm:$0xf]
    %v98 = vlaneseq
    %v99 = vshrl.u32 %v98, 7
    %v100 = vsub.s32 0, %v99
    %v101 = vrot.slane %v96, %v100
    %v102 = vlaneseq
    %v103 = vshrl.u32 %v102, 7
    %v104 = vsub.s32 1, %v103
    %v105 = vrot.slane %v96, %v104
    %v106 = vlaneseq
    %v107 = vshrl.u32 %v106, 7
    %v108 = vsub.s32 2, %v107
    %v109 = vrot.slane %v96, %v108
    %v110 = vlaneseq
    %v111 = vshrl.u32 %v110, 7
    %v112 = vsub.s32 3, %v111
    %v113 = vrot.slane %v96, %v112
    %v118 = vmul.f32 %v92, %v101
    %v119 = vmul.f32 %v93, %v105
    %v120 = vmul.f32 %v94, %v109
    %v121 = vmul.f32 %v95, %v113
    %v122 = vld [vmem:[%s2] sm:$0xf]
    %v124 = vlaneseq
    %v125 = vshrl.u32 %v124, 7
    %v126 = vsub.s32 0, %v125
    %v127 = vrot.slane %v122, %v126
    %v128 = vlaneseq
    %v129 = vshrl.u32 %v128, 7
    %v130 = vsub.s32 1, %v129
    %v131 = vrot.slane %v122, %v130
    %v132 = vlaneseq
    %v133 = vshrl.u32 %v132, 7
    %v134 = vsub.s32 2, %v133
    %v135 = vrot.slane %v122, %v134
    %v136 = vlaneseq
    %v137 = vshrl.u32 %v136, 7
    %v138 = vsub.s32 3, %v137
    %v139 = vrot.slane %v122, %v138
    %v144 = vadd.f32 %v118, %v127
    %v145 = vadd.f32 %v119, %v131
    %v146 = vadd.f32 %v120, %v135
    %v147 = vadd.f32 %v121, %v139
    %v148 = vpack.c.bf16 %v144, %v144
    %v149 = vpack.c.bf16 %v145, %v145
    %v150 = vpack.c.bf16 %v146, %v146
    %v151 = vpack.c.bf16 %v147, %v147
    %v152 = vld [vmem:[#allocation6] sm:$0xf]
    %v153 = vld [vmem:[#allocation6 + $0x4] sm:$0xf]
    %v154 = vld [vmem:[#allocation6 + $0x8] sm:$0xf]
    %v155 = vld [vmem:[#allocation6 + $0xc] sm:$0xf]
    %v156 = vld [vmem:[#allocation6 + $0x10] sm:$0xf]
    %v157 = vld [vmem:[#allocation6 + $0x14] sm:$0xf]
    %v158 = vld [vmem:[#allocation6 + $0x18] sm:$0xf]
    %v159 = vld [vmem:[#allocation6 + $0x1c] sm:$0xf]
    %v160 = vld [vmem:[#allocation6 + $0x20] sm:$0xf]
    %v161 = vld [vmem:[#allocation6 + $0x24] sm:$0xf]
    %v162 = vld [vmem:[#allocation6 + $0x28] sm:$0xf]
    %v163 = vld [vmem:[#allocation6 + $0x2c] sm:$0xf]
    %v164 = vld [vmem:[#allocation6 + $0x30] sm:$0xf]
    %v165 = vld [vmem:[#allocation6 + $0x34] sm:$0xf]
    %v166 = vld [vmem:[#allocation6 + $0x38] sm:$0xf]
    %v167 = vld [vmem:[#allocation6 + $0x3c] sm:$0xf]
    %v168 = vld [vmem:[#allocation6 + $0x40] sm:$0xf]
    %v169 = vld [vmem:[#allocation6 + $0x44] sm:$0xf]
    %v170 = vld [vmem:[#allocation6 + $0x48] sm:$0xf]
    %v171 = vld [vmem:[#allocation6 + $0x4c] sm:$0xf]
    %v172 = vld [vmem:[#allocation6 + $0x50] sm:$0xf]
    %v173 = vld [vmem:[#allocation6 + $0x54] sm:$0xf]
    %v174 = vld [vmem:[#allocation6 + $0x58] sm:$0xf]
    %v175 = vld [vmem:[#allocation6 + $0x5c] sm:$0xf]
    %v176 = vld [vmem:[#allocation6 + $0x60] sm:$0xf]
    %v177 = vld [vmem:[#allocation6 + $0x64] sm:$0xf]
    %v178 = vld [vmem:[#allocation6 + $0x68] sm:$0xf]
    %v179 = vld [vmem:[#allocation6 + $0x6c] sm:$0xf]
    %v180 = vld [vmem:[#allocation6 + $0x70] sm:$0xf]
    %v181 = vld [vmem:[#allocation6 + $0x74] sm:$0xf]
    %v182 = vld [vmem:[#allocation6 + $0x78] sm:$0xf]
    %v183 = vld [vmem:[#allocation6 + $0x7c] sm:$0xf]
    %v184 = vld [vmem:[#allocation6 + $0x80] sm:$0xf]
    %v185 = vld [vmem:[#allocation6 + $0x84] sm:$0xf]
    %v186 = vld [vmem:[#allocation6 + $0x88] sm:$0xf]
    %v187 = vld [vmem:[#allocation6 + $0x8c] sm:$0xf]
    %v188 = vld [vmem:[#allocation6 + $0x90] sm:$0xf]
    %v189 = vld [vmem:[#allocation6 + $0x94] sm:$0xf]
    %v190 = vld [vmem:[#allocation6 + $0x98] sm:$0xf]
    %v191 = vld [vmem:[#allocation6 + $0x9c] sm:$0xf]
    %v192 = vld [vmem:[#allocation6 + $0xa0] sm:$0xf]
    %v193 = vld [vmem:[#allocation6 + $0xa4] sm:$0xf]
    %v194 = vld [vmem:[#allocation6 + $0xa8] sm:$0xf]
    %v195 = vld [vmem:[#allocation6 + $0xac] sm:$0xf]
    %v196 = vld [vmem:[#allocation6 + $0xb0] sm:$0xf]
    %v197 = vld [vmem:[#allocation6 + $0xb4] sm:$0xf]
    %v198 = vld [vmem:[#allocation6 + $0xb8] sm:$0xf]
    %v199 = vld [vmem:[#allocation6 + $0xbc] sm:$0xf]
    %v200 = vld [vmem:[#allocation6 + $0xc0] sm:$0xf]
    %v201 = vld [vmem:[#allocation6 + $0xc4] sm:$0xf]
    %v202 = vld [vmem:[#allocation6 + $0xc8] sm:$0xf]
    %v203 = vld [vmem:[#allocation6 + $0xcc] sm:$0xf]
    %v204 = vld [vmem:[#allocation6 + $0xd0] sm:$0xf]
    %v205 = vld [vmem:[#allocation6 + $0xd4] sm:$0xf]
    %v206 = vld [vmem:[#allocation6 + $0xd8] sm:$0xf]
    %v207 = vld [vmem:[#allocation6 + $0xdc] sm:$0xf]
    %v208 = vld [vmem:[#allocation6 + $0xe0] sm:$0xf]
    %v209 = vld [vmem:[#allocation6 + $0xe4] sm:$0xf]
    %v210 = vld [vmem:[#allocation6 + $0xe8] sm:$0xf]
    %v211 = vld [vmem:[#allocation6 + $0xec] sm:$0xf]
    %v212 = vld [vmem:[#allocation6 + $0xf0] sm:$0xf]
    %v213 = vld [vmem:[#allocation6 + $0xf4] sm:$0xf]
    %v214 = vld [vmem:[#allocation6 + $0xf8] sm:$0xf]
    %v215 = vld [vmem:[#allocation6 + $0xfc] sm:$0xf]
    %v216 = vld [vmem:[%s4] sm:$0x1]
    %v218 = vlaneseq
    %v219 = vshrl.u32 %v218, 7
    %v220 = vsub.s32 0, %v219
    %v221 = vrot.slane %v216, %v220
    %v287 = vunpack.c.l.b16 %v152
    %v288 = vunpack.c.l.b16 %v153
    %v289 = vunpack.c.l.b16 %v154
    %v290 = vunpack.c.l.b16 %v155
    %v291 = vunpack.c.l.b16 %v156
    %v292 = vunpack.c.l.b16 %v157
    %v293 = vunpack.c.l.b16 %v158
    %v294 = vunpack.c.l.b16 %v159
    %v295 = vunpack.c.l.b16 %v160
    %v296 = vunpack.c.l.b16 %v161
    %v297 = vunpack.c.l.b16 %v162
    %v298 = vunpack.c.l.b16 %v163
    %v299 = vunpack.c.l.b16 %v164
    %v300 = vunpack.c.l.b16 %v165
    %v301 = vunpack.c.l.b16 %v166
    %v302 = vunpack.c.l.b16 %v167
    %v303 = vunpack.c.l.b16 %v168
    %v304 = vunpack.c.l.b16 %v169
    %v305 = vunpack.c.l.b16 %v170
    %v306 = vunpack.c.l.b16 %v171
    %v307 = vunpack.c.l.b16 %v172
    %v308 = vunpack.c.l.b16 %v173
    %v309 = vunpack.c.l.b16 %v174
    %v310 = vunpack.c.l.b16 %v175
    %v311 = vunpack.c.l.b16 %v176
    %v312 = vunpack.c.l.b16 %v177
    %v313 = vunpack.c.l.b16 %v178
    %v314 = vunpack.c.l.b16 %v179
    %v315 = vunpack.c.l.b16 %v180
    %v316 = vunpack.c.l.b16 %v181
    %v317 = vunpack.c.l.b16 %v182
    %v318 = vunpack.c.l.b16 %v183
    %v319 = vunpack.c.l.b16 %v184
    %v320 = vunpack.c.l.b16 %v185
    %v321 = vunpack.c.l.b16 %v186
    %v322 = vunpack.c.l.b16 %v187
    %v323 = vunpack.c.l.b16 %v188
    %v324 = vunpack.c.l.b16 %v189
    %v325 = vunpack.c.l.b16 %v190
    %v326 = vunpack.c.l.b16 %v191
    %v327 = vunpack.c.l.b16 %v192
    %v328 = vunpack.c.l.b16 %v193
    %v329 = vunpack.c.l.b16 %v194
    %v330 = vunpack.c.l.b16 %v195
    %v331 = vunpack.c.l.b16 %v196
    %v332 = vunpack.c.l.b16 %v197
    %v333 = vunpack.c.l.b16 %v198
    %v334 = vunpack.c.l.b16 %v199
    %v335 = vunpack.c.l.b16 %v200
    %v336 = vunpack.c.l.b16 %v201
    %v337 = vunpack.c.l.b16 %v202
    %v338 = vunpack.c.l.b16 %v203
    %v339 = vunpack.c.l.b16 %v204
    %v340 = vunpack.c.l.b16 %v205
    %v341 = vunpack.c.l.b16 %v206
    %v342 = vunpack.c.l.b16 %v207
    %v343 = vunpack.c.l.b16 %v208
    %v344 = vunpack.c.l.b16 %v209
    %v345 = vunpack.c.l.b16 %v210
    %v346 = vunpack.c.l.b16 %v211
    %v347 = vunpack.c.l.b16 %v212
    %v348 = vunpack.c.l.b16 %v213
    %v349 = vunpack.c.l.b16 %v214
    %v350 = vunpack.c.l.b16 %v215
    %v351 = vpack.c.b16 %v288, %v287
    %v352 = vpack.c.b16 %v290, %v289
    %v353 = vpack.c.b16 %v292, %v291
    %v354 = vpack.c.b16 %v294, %v293
    %v355 = vpack.c.b16 %v296, %v295
    %v356 = vpack.c.b16 %v298, %v297
    %v357 = vpack.c.b16 %v300, %v299
    %v358 = vpack.c.b16 %v302, %v301
    %v359 = vpack.c.b16 %v304, %v303
    %v360 = vpack.c.b16 %v306, %v305
    %v361 = vpack.c.b16 %v308, %v307
    %v362 = vpack.c.b16 %v310, %v309
    %v363 = vpack.c.b16 %v312, %v311
    %v364 = vpack.c.b16 %v314, %v313
    %v365 = vpack.c.b16 %v316, %v315
    %v366 = vpack.c.b16 %v318, %v317
    %v367 = vpack.c.b16 %v320, %v319
    %v368 = vpack.c.b16 %v322, %v321
    %v369 = vpack.c.b16 %v324, %v323
    %v370 = vpack.c.b16 %v326, %v325
    %v371 = vpack.c.b16 %v328, %v327
    %v372 = vpack.c.b16 %v330, %v329
    %v373 = vpack.c.b16 %v332, %v331
    %v374 = vpack.c.b16 %v334, %v333
    %v375 = vpack.c.b16 %v336, %v335
    %v376 = vpack.c.b16 %v338, %v337
    %v377 = vpack.c.b16 %v340, %v339
    %v378 = vpack.c.b16 %v342, %v341
    %v379 = vpack.c.b16 %v344, %v343
    %v380 = vpack.c.b16 %v346, %v345
    %v381 = vpack.c.b16 %v348, %v347
    %v382 = vpack.c.b16 %v350, %v349
    %415 = vmatprep.subr.bf16.mxu0 0
    %416 = vmatpush1.bf16.msra.mxu0 %v351
    %417 = vmatprep.subr.bf16.mxu0 0
    %418 = vmatpush1.bf16.msra.mxu0 %v352
    %419 = vmatprep.subr.bf16.mxu0 0
    %420 = vmatpush1.bf16.msra.mxu0 %v353
    %421 = vmatprep.subr.bf16.mxu0 0
    %422 = vmatpush1.bf16.msra.mxu0 %v354
    %423 = vmatprep.subr.bf16.mxu0 0
    %424 = vmatpush1.bf16.msra.mxu0 %v355
    %425 = vmatprep.subr.bf16.mxu0 0
    %426 = vmatpush1.bf16.msra.mxu0 %v356
    %427 = vmatprep.subr.bf16.mxu0 0
    %428 = vmatpush1.bf16.msra.mxu0 %v357
    %429 = vmatprep.subr.bf16.mxu0 0
    %430 = vmatpush1.bf16.msra.mxu0 %v358
    %431 = vmatprep.subr.bf16.mxu0 0
    %432 = vmatpush1.bf16.msra.mxu0 %v359
    %433 = vmatprep.subr.bf16.mxu0 0
    %434 = vmatpush1.bf16.msra.mxu0 %v360
    %435 = vmatprep.subr.bf16.mxu0 0
    %436 = vmatpush1.bf16.msra.mxu0 %v361
    %437 = vmatprep.subr.bf16.mxu0 0
    %438 = vmatpush1.bf16.msra.mxu0 %v362
    %439 = vmatprep.subr.bf16.mxu0 0
    %440 = vmatpush1.bf16.msra.mxu0 %v363
    %441 = vmatprep.subr.bf16.mxu0 0
    %442 = vmatpush1.bf16.msra.mxu0 %v364
    %443 = vmatprep.subr.bf16.mxu0 0
    %444 = vmatpush1.bf16.msra.mxu0 %v365
    %445 = vmatprep.subr.bf16.mxu0 0
    %446 = vmatpush1.bf16.msra.mxu0 %v366
    %447 = vmatprep.mubr.bf16.mxu0 %v149
    %448 = vmatmul.mubr.bf16.gmra.mrb[0].mxu0 %v148
    %v449 = vpop.f32.mrb[0].mxu0
    %v450 = vadd.f32 %v221, %v449
    %v451 = vpop.f32.mrb[0].mxu0
    %v452 = vpop.f32.mrb[0].mxu0
    %v453 = vpop.f32.mrb[0].mxu0
    %454 = vdwg.mxu0
    %455 = vmatprep.subr.bf16.mxu0 0
    %456 = vmatpush1.bf16.msra.mxu0 %v367
    %457 = vmatprep.subr.bf16.mxu0 0
    %458 = vmatpush1.bf16.msra.mxu0 %v368
    %459 = vmatprep.subr.bf16.mxu0 0
    %460 = vmatpush1.bf16.msra.mxu0 %v369
    %461 = vmatprep.subr.bf16.mxu0 0
    %462 = vmatpush1.bf16.msra.mxu0 %v370
    %463 = vmatprep.subr.bf16.mxu0 0
    %464 = vmatpush1.bf16.msra.mxu0 %v371
    %465 = vmatprep.subr.bf16.mxu0 0
    %466 = vmatpush1.bf16.msra.mxu0 %v372
    %467 = vmatprep.subr.bf16.mxu0 0
    %468 = vmatpush1.bf16.msra.mxu0 %v373
    %469 = vmatprep.subr.bf16.mxu0 0
    %470 = vmatpush1.bf16.msra.mxu0 %v374
    %471 = vmatprep.subr.bf16.mxu0 0
    %472 = vmatpush1.bf16.msra.mxu0 %v375
    %473 = vmatprep.subr.bf16.mxu0 0
    %474 = vmatpush1.bf16.msra.mxu0 %v376
    %475 = vmatprep.subr.bf16.mxu0 0
    %476 = vmatpush1.bf16.msra.mxu0 %v377
    %477 = vmatprep.subr.bf16.mxu0 0
    %478 = vmatpush1.bf16.msra.mxu0 %v378
    %479 = vmatprep.subr.bf16.mxu0 0
    %480 = vmatpush1.bf16.msra.mxu0 %v379
    %481 = vmatprep.subr.bf16.mxu0 0
    %482 = vmatpush1.bf16.msra.mxu0 %v380
    %483 = vmatprep.subr.bf16.mxu0 0
    %484 = vmatpush1.bf16.msra.mxu0 %v381
    %485 = vmatprep.subr.bf16.mxu0 0
    %486 = vmatpush1.bf16.msra.mxu0 %v382
    %487 = vmatprep.mubr.bf16.mxu0 %v151
    %488 = vmatmul.mubr.bf16.gmra.mrb[0].mxu0 %v150
    %v489 = vpop.f32.mrb[0].mxu0
    %v490 = vadd.f32 %v450, %v489
    %v491 = vpop.f32.mrb[0].mxu0
    %v492 = vpop.f32.mrb[0].mxu0
    %v493 = vpop.f32.mrb[0].mxu0
    %494 = vdwg.mxu0
    %v495 = vtanh.pop %v490
    %v496 = vld [vmem:[%s5] sm:$0x1]
    %v498 = vlaneseq
    %v499 = vshrl.u32 %v498, 7
    %v500 = vsub.s32 0, %v499
    %v501 = vrot.slane %v496, %v500
    %v503 = vmul.f32 %v495, %v501
    %504 = vadd.xlane.f32.xlu0 %v503
    %v505 = vpop.xlane.xlu0 %504
    %v506 = vlaneseq
    %v507 = vshrl.u32 %v506, 7
    %vm508 = vcmp.lt.s32.totalorder %v507, 8
    %v509 = vsel %vm508, %v505, -inf
    %v510 = vrot.slane %v509, 4
    %v511 = vmax.f32 %v509, %v510
    %v512 = vrot.slane %v511, 2
    %v513 = vmax.f32 %v511, %v512
    %v514 = vrot.slane %v513, 1
    %v515 = vmax.f32 %v513, %v514
    %v516 = vsub.f32 %v509, %v515
    %v517 = vmul.f32 %v516, 1.442695
    %v518 = vpow.pop %v517
    %v519 = vrot.slane %v518, 4
    %v520 = vadd.f32 %v518, %v519
    %v521 = vrot.slane %v520, 2
    %v522 = vadd.f32 %v520, %v521
    %v523 = vrot.slane %v522, 1
    %v524 = vadd.f32 %v522, %v523
    %v525 = vrcp.pop %v524
    %v526 = vmul.f32 %v518, %v525
    %vm527 = vcmask 7168
    %528 = vst.msk [vmem:[%s6] sm:$0xff] %vm527, %v526
    // Predicated region
    $region38: #{tpu_custom_call.1} parent=1 // pred_check
      _
    $region39: #{tpu_custom_call.1} parent=1 // pred_check_branch
      %530 = sbr.rel (0) target = $region41
    $region40: #{tpu_custom_call.1} parent=1 // pred_region
      _
    $region41: #{tpu_custom_call.1} parent=1 // pred_fallthru
      _
    // Predicated region
    $region42: #{tpu_custom_call.1} parent=1 // pred_check
      _
    $region43: #{tpu_custom_call.1} parent=1 // pred_check_branch
      %532 = sbr.rel (0) target = $region45
    $region44: #{tpu_custom_call.1} parent=1 // pred_region
      _
    $region45: #{tpu_custom_call.1} parent=1 // pred_fallthru
      _
    %533 = vsyncpa [#allocation3], 1
    %534 = vsyncpa [#allocation5], 1

</llo_original>
